<compile_context>
chip_gen: v5e
topology: v5e:2x2
jax: 0.10.0
libtpu: 0.0.40
codegen_flags: <defaults>
</compile_context>

<pallas_src>
import functools
import math

import jax
import jax.numpy as jnp
from jax.experimental import pallas as pl
from jax.experimental.pallas import tpu as pltpu

BN_EPS = 1e-5          # cfg.bn.eps default in GraphGym
BN_MOM = 0.1           # cfg.bn.mom (only affects running stats, not fwd output)

_LANE = 128
_SUBLANE = 8
_FUSE_BYTES = 4 * 1024 * 1024       # folded f32 bytes at/below this -> fused single pass
_MAX_FOLD_LANES = 1024              # don't fold D above this width (lane waste already small)


def _round_up(x, m):
    return (x + m - 1) // m * m


def _vmem_and_block_budget():
    """(vmem_limit_bytes, pass1_block_bytes, pass2_block_bytes) per TPU generation."""
    try:
        cap = pltpu.get_tpu_info().vmem_capacity_bytes
    except Exception:
        cap = 0
    if cap >= 96 * 1024 * 1024:          # v5e / v6e: 128 MiB physical VMEM
        return 64 * 1024 * 1024, 8 * 1024 * 1024, 6 * 1024 * 1024
    # v7x (64 MiB physical) or unknown: stay conservative.
    return 40 * 1024 * 1024, 6 * 1024 * 1024, 4 * 1024 * 1024


def _choose_tiles(rows, lanes, block_bytes, itemsize):
    """Pick (lane_tile, n_lane, row_tile, n_row).  Prefer full-width lane tiles."""
    if lanes <= _LANE or _SUBLANE * lanes * itemsize <= block_bytes:
        lane_tile = lanes                                   # contiguous bursts, unmasked vst
    else:
        lane_tile = max(_LANE, (block_bytes // (_SUBLANE * itemsize)) // _LANE * _LANE)
    n_lane = pl.cdiv(lanes, lane_tile)

    rt = max(_SUBLANE, block_bytes // (lane_tile * itemsize))
    if rt >= rows:
        row_tile = rows                                     # single full-dim row block
    else:
        row_tile = max(_SUBLANE, rt // _SUBLANE * _SUBLANE)
    n_row = pl.cdiv(rows, row_tile)
    return lane_tile, n_lane, row_tile, n_row


# ----------------------------------------------------------------------------
# Kernels
# ----------------------------------------------------------------------------
def _fused_kernel(x_ref, w_ref, b_ref, o_ref, *, inv_e, eps, fold, feat):
    """Single-pass BN: stats + affine + normalize on a VMEM-resident block."""
    x = x_ref[...].astype(jnp.float32)
    s = jnp.sum(x, axis=0, keepdims=True)           # (1, lanes) per-lane sums
    ss = jnp.sum(x * x, axis=0, keepdims=True)
    # Lane l holds feature (l % feat).  Summing cyclic lane rotations by k*feat
    # gives every lane its per-feature total, already broadcast back to lanes.
    s_c, ss_c = s, ss
    for k in range(1, fold):
        s_c = s_c + pltpu.roll(s, shift=k * feat, axis=1)
        ss_c = ss_c + pltpu.roll(ss, shift=k * feat, axis=1)
    mean = s_c * inv_e
    var = jnp.maximum(ss_c * inv_e - mean * mean, 0.0)      # biased variance
    scale = w_ref[...] * jax.lax.rsqrt(var + eps)
    shift = b_ref[...] - mean * scale
    o_ref[...] = (x * scale + shift).astype(o_ref.dtype)


def _stats_kernel(x_ref, sum_ref, sumsq_ref, *, rows, row_tile, ragged):
    """Per-(row-block, lane) partial sums.  All grid axes parallel (no accumulator)."""
    x = x_ref[...].astype(jnp.float32)
    if ragged:
        # Tail row block extends past the array: out-of-bounds reads are
        # unspecified, so mask them to zero before reducing.
        start = pl.program_id(1) * row_tile
        rid = jax.lax.broadcasted_iota(jnp.int32, x.shape, 0)
        x = jnp.where(rid < rows - start, x, 0.0)
    sum_ref[...] = jnp.sum(x, axis=0, keepdims=True)[None]
    sumsq_ref[...] = jnp.sum(x * x, axis=0, keepdims=True)[None]


def _normalize_kernel(x_ref, sum_ref, sumsq_ref, w_ref, b_ref, o_ref, *, inv_e, eps):
    """y = x * scale + shift, with scale/shift computed in-kernel (EUP rsqrt is free)."""
    mean = sum_ref[...] * inv_e
    var = jnp.maximum(sumsq_ref[...] * inv_e - mean * mean, 0.0)
    scale = w_ref[...] * jax.lax.rsqrt(var + eps)
    shift = b_ref[...] - mean * scale
    x = x_ref[...].astype(jnp.float32)
    o_ref[...] = (x * scale + shift).astype(o_ref.dtype)


# ----------------------------------------------------------------------------
# Wrapper
# ----------------------------------------------------------------------------
def batchnorm1d_edge(edge_feature, weight, bias, eps=BN_EPS):
    """Training-mode BatchNorm1d over (E, D) edge features; applied only when E > 1."""
    E, D = edge_feature.shape
    if E <= 1:
        # Module returns the batch unchanged when there is at most one edge.
        return edge_feature

    out_dtype = edge_feature.dtype
    out_itemsize = jnp.dtype(out_dtype).itemsize
    vmem_limit, p1_bytes, p2_bytes = _vmem_and_block_budget()

    # ---- Lane-dense fold: (E, D) -> (rows, fold*D), fold*D a multiple of 128 ----
    fold = _LANE // math.gcd(D, _LANE)
    if fold > 1 and fold * D > _MAX_FOLD_LANES:
        fold = 1                     # D is large already; lane waste without folding is small
    x = edge_feature
    pad_rows = (-E) % fold           # <= fold-1 zero rows (cheap; vs. 4x D-padding before)
    if pad_rows:
        x = jnp.pad(x, ((0, pad_rows), (0, 0)))
    rows = (E + pad_rows) // fold
    lanes = fold * D
    x2 = x.reshape(rows, lanes)      # contiguous relayout, no extra HBM traffic

    w_l = jnp.tile(weight.astype(jnp.float32), fold).reshape(1, lanes)
    b_l = jnp.tile(bias.astype(jnp.float32), fold).reshape(1, lanes)
    inv_e = 1.0 / float(E)           # zero-padded rows contribute nothing to sum/sumsq
    itemsize = jnp.dtype(x2.dtype).itemsize

    if rows * lanes * 4 <= _FUSE_BYTES:
        # ---------------- Fused single-pass fast path ----------------
        y2 = pl.pallas_call(
            functools.partial(_fused_kernel, inv_e=inv_e, eps=eps, fold=fold, feat=D),
            out_shape=jax.ShapeDtypeStruct((rows, lanes), out_dtype),
            grid=(1,),
            in_specs=[
                pl.BlockSpec((rows, lanes), lambda i: (0, 0)),
                pl.BlockSpec((1, lanes), lambda i: (0, 0)),
                pl.BlockSpec((1, lanes), lambda i: (0, 0)),
            ],
            out_specs=pl.BlockSpec((rows, lanes), lambda i: (0, 0)),
            compiler_params=pltpu.CompilerParams(vmem_limit_bytes=vmem_limit),
            cost_estimate=pl.CostEstimate(
                flops=6 * rows * lanes,
                transcendentals=lanes,
                bytes_accessed=rows * lanes * (itemsize + out_itemsize) + 2 * lanes * 4,
            ),
        )(x2, w_l, b_l)
    else:
        # ---------------- Pass 1: per-row-block partial sums ----------------
        lane_tile, n_lane, row_tile, n_row = _choose_tiles(rows, lanes, p1_bytes, itemsize)
        ragged = (rows % row_tile) != 0
        psum, psumsq = pl.pallas_call(
            functools.partial(_stats_kernel, rows=rows, row_tile=row_tile, ragged=ragged),
            out_shape=(
                jax.ShapeDtypeStruct((n_row, 1, lanes), jnp.float32),
                jax.ShapeDtypeStruct((n_row, 1, lanes), jnp.float32),
            ),
            grid=(n_lane, n_row),
            in_specs=[pl.BlockSpec((row_tile, lane_tile), lambda j, i: (i, j))],
            out_specs=(
                pl.BlockSpec((1, 1, lane_tile), lambda j, i: (i, 0, j)),
                pl.BlockSpec((1, 1, lane_tile), lambda j, i: (i, 0, j)),
            ),
            compiler_params=pltpu.CompilerParams(
                dimension_semantics=("parallel", "parallel"),
                vmem_limit_bytes=vmem_limit,
            ),
            cost_estimate=pl.CostEstimate(
                flops=3 * rows * lanes,
                transcendentals=0,
                bytes_accessed=rows * lanes * itemsize + 2 * n_row * lanes * 4,
            ),
        )(x2)

        # Tiny epilogue on (n_row, lanes): pairwise combine of partial sums
        # (better numerics for huge E) + fold-group combine.  KB-sized.
        sum_lane = jnp.sum(psum[:, 0, :], axis=0)
        sumsq_lane = jnp.sum(psumsq[:, 0, :], axis=0)
        if fold > 1:
            sum_lane = jnp.tile(jnp.sum(sum_lane.reshape(fold, D), axis=0), fold)
            sumsq_lane = jnp.tile(jnp.sum(sumsq_lane.reshape(fold, D), axis=0), fold)
        sum_l = sum_lane.reshape(1, lanes)
        sumsq_l = sumsq_lane.reshape(1, lanes)

        # ---------------- Pass 2: normalize (scale/shift in-kernel) ----------------
        lane_tile2, n_lane2, row_tile2, n_row2 = _choose_tiles(rows, lanes, p2_bytes, itemsize)
        y2 = pl.pallas_call(
            functools.partial(_normalize_kernel, inv_e=inv_e, eps=eps),
            out_shape=jax.ShapeDtypeStruct((rows, lanes), out_dtype),
            grid=(n_lane2, n_row2),
            in_specs=[
                pl.BlockSpec((row_tile2, lane_tile2), lambda j, i: (i, j)),
                pl.BlockSpec((1, lane_tile2), lambda j, i: (0, j)),
                pl.BlockSpec((1, lane_tile2), lambda j, i: (0, j)),
                pl.BlockSpec((1, lane_tile2), lambda j, i: (0, j)),
                pl.BlockSpec((1, lane_tile2), lambda j, i: (0, j)),
            ],
            out_specs=pl.BlockSpec((row_tile2, lane_tile2), lambda j, i: (i, j)),
            compiler_params=pltpu.CompilerParams(
                dimension_semantics=("parallel", "parallel"),
                vmem_limit_bytes=vmem_limit,
            ),
            cost_estimate=pl.CostEstimate(
                flops=2 * rows * lanes,
                transcendentals=n_row2 * lanes,
                bytes_accessed=rows * lanes * (itemsize + out_itemsize) + 4 * lanes * 4,
            ),
        )(x2, sum_l, sumsq_l, w_l, b_l)

    # ---- Un-fold / un-pad (both are no-ops on the common divisible path) ----
    if fold > 1:
        y = y2.reshape(rows * fold, D)
        if pad_rows:
            y = y[:E]
        return y
    return y2


if __name__ == "__main__":
    key = jax.random.PRNGKey(0)
    k_x, k_w, k_b, k_x2 = jax.random.split(key, 4)

    def reference(x, w, b):
        mean = jnp.mean(x, axis=0, keepdims=True)
        var = jnp.mean((x - mean) ** 2, axis=0, keepdims=True)   # biased, training-mode
        return (x - mean) / jnp.sqrt(var + BN_EPS) * w[None, :] + b[None, :]

    dim_in = 32          # edge feature dim (folded internally to a 128-lane layout)
    # nn.BatchNorm1d init is weight=1, bias=0; perturb slightly to exercise the affine.
    weight = 1.0 + 0.1 * jax.random.normal(k_w, (dim_in,), dtype=jnp.float32)
    bias = 0.1 * jax.random.normal(k_b, (dim_in,), dtype=jnp.float32)

    # Small batch (module-typical demo shape) -> fused single-pass path.
    num_edges = 8        # E > 1, so the BN path is exercised
    x_small = jax.random.normal(k_x, (num_edges, dim_in), dtype=jnp.float32)
    out_small = jax.block_until_ready(batchnorm1d_edge(x_small, weight, bias))
    assert out_small.shape == x_small.shape and out_small.dtype == x_small.dtype
    assert jnp.allclose(out_small, reference(x_small, weight, bias), atol=1e-4, rtol=1e-4), \
        "fused path mismatch vs reference"

    # Larger batch -> tiled two-pass path (also exercises row-fold padding and
    # the in-kernel ragged-tail masking).
    num_edges_big = 66002
    x_big = jax.random.normal(k_x2, (num_edges_big, dim_in), dtype=jnp.float32)
    out_big = jax.block_until_ready(batchnorm1d_edge(x_big, weight, bias))
    assert out_big.shape == x_big.shape and out_big.dtype == x_big.dtype
    assert jnp.allclose(out_big, reference(x_big, weight, bias), atol=1e-4, rtol=1e-4), \
        "tiled path mismatch vs reference"

    # TODO(synk): running_mean/running_var momentum update is a training side-effect of
    # nn.BatchNorm1d and does not affect the forward output; intentionally not implemented.

    print("KERNEL_OK")
</pallas_src>

<mosaic_0001>
module attributes {stable_mosaic.version = 11 : i64} {
  func.func @_fused_kernel(%arg0: i32, %arg1: memref<2x128xf32, #tpu.memory_space<vmem>>, %arg2: memref<1x128xf32, #tpu.memory_space<vmem>>, %arg3: memref<1x128xf32, #tpu.memory_space<vmem>>, %arg4: memref<2x128xf32, #tpu.memory_space<vmem>>) attributes {dimension_semantics = [#tpu.dimension_semantics<arbitrary>], iteration_bounds = array<i64: 1>, scalar_prefetch = 0 : i64, scratch_operands = 0 : i64, tpu.core_type = #tpu.core_type<tc>, window_params = [{pipeline_mode = #tpu.pipeline_mode<synchronous>, transform_indices = @transform_0, window_bounds = array<i64: 2, 128>}, {pipeline_mode = #tpu.pipeline_mode<synchronous>, transform_indices = @transform_1, window_bounds = array<i64: 1, 128>}, {pipeline_mode = #tpu.pipeline_mode<synchronous>, transform_indices = @transform_2, window_bounds = array<i64: 1, 128>}, {pipeline_mode = #tpu.pipeline_mode<synchronous>, transform_indices = @transform_3, window_bounds = array<i64: 2, 128>}]} {
    %c0 = arith.constant 0 : index
    %c0_0 = arith.constant 0 : index
    %0 = vector.load %arg1[%c0, %c0_0] : memref<2x128xf32, #tpu.memory_space<vmem>>, vector<2x128xf32>
    %cst = arith.constant dense<0.000000e+00> : vector<128xf32>
    %1 = vector.multi_reduction <add>, %0, %cst [0] : vector<2x128xf32> to vector<128xf32>
    %2 = vector.shape_cast %1 : vector<128xf32> to vector<1x128xf32>
    %3 = arith.mulf %0, %0 : vector<2x128xf32>
    %cst_1 = arith.constant dense<0.000000e+00> : vector<128xf32>
    %4 = vector.multi_reduction <add>, %3, %cst_1 [0] : vector<2x128xf32> to vector<128xf32>
    %5 = vector.shape_cast %4 : vector<128xf32> to vector<1x128xf32>
    %c32_i32 = arith.constant 32 : i32
    %6 = tpu.dynamic_rotate %2 by %c32_i32 dim 1 : vector<1x128xf32>, i32 -> vector<1x128xf32>
    %7 = arith.addf %2, %6 : vector<1x128xf32>
    %c32_i32_2 = arith.constant 32 : i32
    %8 = tpu.dynamic_rotate %5 by %c32_i32_2 dim 1 : vector<1x128xf32>, i32 -> vector<1x128xf32>
    %9 = arith.addf %5, %8 : vector<1x128xf32>
    %c64_i32 = arith.constant 64 : i32
    %10 = tpu.dynamic_rotate %2 by %c64_i32 dim 1 : vector<1x128xf32>, i32 -> vector<1x128xf32>
    %11 = arith.addf %7, %10 : vector<1x128xf32>
    %c64_i32_3 = arith.constant 64 : i32
    %12 = tpu.dynamic_rotate %5 by %c64_i32_3 dim 1 : vector<1x128xf32>, i32 -> vector<1x128xf32>
    %13 = arith.addf %9, %12 : vector<1x128xf32>
    %c96_i32 = arith.constant 96 : i32
    %14 = tpu.dynamic_rotate %2 by %c96_i32 dim 1 : vector<1x128xf32>, i32 -> vector<1x128xf32>
    %15 = arith.addf %11, %14 : vector<1x128xf32>
    %c96_i32_4 = arith.constant 96 : i32
    %16 = tpu.dynamic_rotate %5 by %c96_i32_4 dim 1 : vector<1x128xf32>, i32 -> vector<1x128xf32>
    %17 = arith.addf %13, %16 : vector<1x128xf32>
    %cst_5 = arith.constant 1.250000e-01 : f32
    %18 = vector.broadcast %cst_5 : f32 to vector<1x128xf32>
    %19 = arith.mulf %15, %18 : vector<1x128xf32>
    %cst_6 = arith.constant 1.250000e-01 : f32
    %20 = vector.broadcast %cst_6 : f32 to vector<1x128xf32>
    %21 = arith.mulf %17, %20 : vector<1x128xf32>
    %22 = arith.mulf %19, %19 : vector<1x128xf32>
    %23 = arith.subf %21, %22 : vector<1x128xf32>
    %cst_7 = arith.constant 0.000000e+00 : f32
    %24 = vector.broadcast %cst_7 : f32 to vector<1x128xf32>
    %25 = arith.maximumf %23, %24 : vector<1x128xf32>
    %c0_8 = arith.constant 0 : index
    %c0_9 = arith.constant 0 : index
    %26 = vector.load %arg2[%c0_8, %c0_9] : memref<1x128xf32, #tpu.memory_space<vmem>>, vector<1x128xf32>
    %cst_10 = arith.constant 9.99999974E-6 : f32
    %27 = vector.broadcast %cst_10 : f32 to vector<1x128xf32>
    %28 = arith.addf %25, %27 : vector<1x128xf32>
    %29 = math.rsqrt %28 : vector<1x128xf32>
    %30 = arith.mulf %26, %29 : vector<1x128xf32>
    %c0_11 = arith.constant 0 : index
    %c0_12 = arith.constant 0 : index
    %31 = vector.load %arg3[%c0_11, %c0_12] : memref<1x128xf32, #tpu.memory_space<vmem>>, vector<1x128xf32>
    %32 = arith.mulf %19, %30 : vector<1x128xf32>
    %33 = arith.subf %31, %32 : vector<1x128xf32>
    %34 = vector.broadcast %30 : vector<1x128xf32> to vector<2x128xf32>
    %35 = arith.mulf %0, %34 : vector<2x128xf32>
    %36 = vector.broadcast %33 : vector<1x128xf32> to vector<2x128xf32>
    %37 = arith.addf %35, %36 : vector<2x128xf32>
    %c0_13 = arith.constant 0 : index
    %c0_14 = arith.constant 0 : index
    %38 = vector.load %arg4[%c0_13, %c0_14] : memref<2x128xf32, #tpu.memory_space<vmem>>, vector<2x128xf32>
    tpu.vector_store %arg4[%c0_13, %c0_14], %37 {strides = array<i32>} : memref<2x128xf32, #tpu.memory_space<vmem>>, vector<2x128xf32>,
    return
  }
  func.func @transform_0(%arg0: i32) -> (i32, i32) {
    %c0_i32 = arith.constant 0 : i32
    %c0_i32_0 = arith.constant 0 : i32
    %c0_i32_1 = arith.constant 0 : i32
    return %c0_i32, %c0_i32_0 : i32, i32
  }
  func.func @transform_1(%arg0: i32) -> (i32, i32) {
    %c0_i32 = arith.constant 0 : i32
    %c0_i32_0 = arith.constant 0 : i32
    %c0_i32_1 = arith.constant 0 : i32
    return %c0_i32, %c0_i32_0 : i32, i32
  }
  func.func @transform_2(%arg0: i32) -> (i32, i32) {
    %c0_i32 = arith.constant 0 : i32
    %c0_i32_0 = arith.constant 0 : i32
    %c0_i32_1 = arith.constant 0 : i32
    return %c0_i32, %c0_i32_0 : i32, i32
  }
  func.func @transform_3(%arg0: i32) -> (i32, i32) {
    %c0_i32 = arith.constant 0 : i32
    %c0_i32_0 = arith.constant 0 : i32
    %c0_i32_1 = arith.constant 0 : i32
    return %c0_i32, %c0_i32_0 : i32, i32
  }
}

</mosaic_0001>

<llo_original>
// kernel: tpu_custom_call.1
$region0: #{tpu_custom_call.1}
  #allocation0 [shape = 'u32[]', space=smem, size = 0x4, offset = 0x4, fixed_abs, tag = 'smem constant byte address 0x4 - core index']
  #allocation1 [shape = 'u32[72,128]{1,0:T(1,128)}', space=vmem, size = 0x9000, scoped, tag = 'internal scratch']
  %s0 = inlined_call_operand.hbm [shape: f32[2,128], index: 0, kind: input, shape index: {}]
  %s1 = inlined_call_operand.hbm [shape: f32[1,128], index: 1, kind: input, shape index: {}]
  %s2 = inlined_call_operand.vmem [shape: f32[1,128], index: 2, kind: input, shape index: {}]
  %s3 = inlined_call_operand.hbm [shape: f32[2,128], index: 3, kind: output, shape index: {}]
  %s4 = sld [smem:[#allocation0]]
  $region30: #{tpu_custom_call.1} parent=0
    _
  %s6 = ssub.s32 1, %s4
  %s7 = scalar_select 0, %s6, %s4
  $region1: #{tpu_custom_call.1} parent=0
    #allocation2 [shape = 'u8[1024]{0}', space=vmem, size = 0x400, scoped, tag = 'input window, operand 0, single buffered']
    #allocation3 [shape = 's32[1]{0}', space=sflag, size = 0x4, scoped, tag = 'scoped memory for tpu_custom_call.1']
    #allocation4 [shape = 's32[1]{0}', space=sflag, size = 0x4, scoped, tag = 'scoped memory for tpu_custom_call.1']
    #allocation5 [shape = 'u8[512]{0}', space=vmem, size = 0x400, scoped, tag = 'input window, operand 1, single buffered']
    #allocation6 [shape = 's32[1]{0}', space=sflag, size = 0x4, scoped, tag = 'scoped memory for tpu_custom_call.1']
    #allocation7 [shape = 'u8[1024]{0}', space=vmem, size = 0x400, scoped, tag = 'output window, operand 0, single buffered']
    %8 = vsyncpa [#allocation3], 0
    %9 = vsyncpa [#allocation6], 0
    %10 = vsyncpa [#allocation4], 0
    // Predicated region
    $region2: #{tpu_custom_call.1} parent=1 // pred_check
      _
    $region3: #{tpu_custom_call.1} parent=1 // pred_check_branch
      %12 = sbr.rel (0) target = $region5
    $region4: #{tpu_custom_call.1} parent=1 // pred_region
      %14 = vsyncadd [#allocation3], 0
      %s16 = sshll.u32 %s0, 4
      %s17 = int_to_ptr.hbm [resolvable:$true] %s16
      %s18 = sshll.u32 [#allocation2], 4
      %s19 = int_to_ptr.vmem [resolvable:$true] %s18
      %21 = dma.hbm_to_vmem [thread:$0]  %s17, 32, %s19, [#allocation3]
    $region5: #{tpu_custom_call.1} parent=1 // pred_fallthru
      _
    // Predicated region
    $region6: #{tpu_custom_call.1} parent=1 // pred_check
      _
    $region7: #{tpu_custom_call.1} parent=1 // pred_check_branch
      %23 = sbr.rel (0) target = $region9
    $region8: #{tpu_custom_call.1} parent=1 // pred_region
      %25 = vsyncadd [#allocation6], 0
      %s27 = sshll.u32 %s1, 4
      %s28 = int_to_ptr.hbm [resolvable:$true] %s27
      %s29 = sshll.u32 [#allocation5], 4
      %s30 = int_to_ptr.vmem [resolvable:$true] %s29
      %32 = dma.hbm_to_vmem [thread:$0]  %s28, 16, %s30, [#allocation6]
    $region9: #{tpu_custom_call.1} parent=1 // pred_fallthru
      _
    // Predicated region
    $region10: #{tpu_custom_call.1} parent=1 // pred_check
      _
    $region11: #{tpu_custom_call.1} parent=1 // pred_check_branch
      %34 = sbr.rel (0) target = $region13
    $region12: #{tpu_custom_call.1} parent=1 // pred_region
      _
    $region13: #{tpu_custom_call.1} parent=1 // pred_fallthru
      _
    // Predicated region
    $region14: #{tpu_custom_call.1} parent=1 // pred_check
      _
    $region15: #{tpu_custom_call.1} parent=1 // pred_check_branch
      %36 = sbr.rel (0) target = $region17
    $region16: #{tpu_custom_call.1} parent=1 // pred_region
      %38 = dma.done [#allocation3], 32
    $region17: #{tpu_custom_call.1} parent=1 // pred_fallthru
      _
    // Predicated region
    $region18: #{tpu_custom_call.1} parent=1 // pred_check
      _
    $region19: #{tpu_custom_call.1} parent=1 // pred_check_branch
      %40 = sbr.rel (0) target = $region21
    $region20: #{tpu_custom_call.1} parent=1 // pred_region
      %42 = dma.done [#allocation6], 16
    $region21: #{tpu_custom_call.1} parent=1 // pred_fallthru
      _
    %v43 = vld [vmem:[#allocation2] sm:$0x3]
    %vm44 = vcmask 1041408
    %v45 = vsel %vm44, %v43, 0.0
    %v46 = vrot.slane %v45, 4
    %v47 = vadd.f32 %v45, %v46
    %v48 = vrot.slane %v47, 2
    %v49 = vadd.f32 %v47, %v48
    %v50 = vrot.slane %v49, 1
    %v51 = vadd.f32 %v49, %v50
    %v52 = vmul.f32 %v43, %v43
    %v53 = vsel %vm44, %v52, 0.0
    %v54 = vrot.slane %v53, 4
    %v55 = vadd.f32 %v53, %v54
    %v56 = vrot.slane %v55, 2
    %v57 = vadd.f32 %v55, %v56
    %v58 = vrot.slane %v57, 1
    %v59 = vadd.f32 %v57, %v58
    %60 = vrot.lane.b32.xlu0 %v51, 32
    %v61 = vpop.permute.xlu0 %60
    %v62 = vadd.f32 %v51, %v61
    %63 = vrot.lane.b32.xlu0 %v59, 32
    %v64 = vpop.permute.xlu0 %63
    %v65 = vadd.f32 %v59, %v64
    %66 = vrot.lane.b32.xlu0 %v51, 64
    %v67 = vpop.permute.xlu0 %66
    %v68 = vadd.f32 %v62, %v67
    %69 = vrot.lane.b32.xlu0 %v59, 64
    %v70 = vpop.permute.xlu0 %69
    %v71 = vadd.f32 %v65, %v70
    %72 = vrot.lane.b32.xlu0 %v51, 96
    %v73 = vpop.permute.xlu0 %72
    %v74 = vadd.f32 %v68, %v73
    %75 = vrot.lane.b32.xlu0 %v59, 96
    %v76 = vpop.permute.xlu0 %75
    %v77 = vadd.f32 %v71, %v76
    %v78 = vmul.f32 %v74, 0.125
    %v79 = vmul.f32 %v77, 0.125
    %v80 = vmul.f32 %v78, %v78
    %v81 = vsub.f32 %v79, %v80
    %v82 = vmax.f32 %v81, 0.0
    %v83 = vld [vmem:[#allocation5] sm:$0x1]
    %v84 = vadd.f32 %v82, 1e-05
    %v85 = vrsqrt.pop %v84
    %v86 = vmul.f32 %v85, %v84
    %v87 = vmul.f32 %v86, %v85
    %v88 = vmul.f32 0.5, %v87
    %v89 = vsub.f32 1.5, %v88
    %v90 = vmul.f32 %v85, %v89
    %vm91 = vweird.f32 %v84
    %vm92 = vweird.f32 %v85
    %vm93 = vmor %vm91, %vm92
    %v94 = vsel %vm93, %v85, %v90
    %v95 = vmul.f32 %v83, %v94
    %v96 = vld [vmem:[%s2] sm:$0x1]
    %v97 = vmul.f32 %v78, %v95
    %v98 = vsub.f32 %v96, %v97
    %v100 = vperm.slane %v95, 0
    %v102 = vmul.f32 %v43, %v100
    %v104 = vperm.slane %v98, 0
    %v106 = vadd.f32 %v102, %v104
    %107 = vst [vmem:[#allocation7] sm:$0x3] %v106
    // Predicated region
    $region22: #{tpu_custom_call.1} parent=1 // pred_check
      _
    $region23: #{tpu_custom_call.1} parent=1 // pred_check_branch
      %109 = sbr.rel (0) target = $region25
    $region24: #{tpu_custom_call.1} parent=1 // pred_region
      %111 = vsyncadd [#allocation4], 0
      %s113 = sshll.u32 [#allocation7], 4
      %s114 = int_to_ptr.vmem [resolvable:$true] %s113
      %s115 = sshll.u32 %s3, 4
      %s116 = int_to_ptr.hbm [resolvable:$true] %s115
      %118 = dma.vmem_to_hbm [thread:$0]  %s114, 32, %s116, [#allocation4]
    $region25: #{tpu_custom_call.1} parent=1 // pred_fallthru
      _
    // Predicated region
    $region26: #{tpu_custom_call.1} parent=1 // pred_check
      _
    $region27: #{tpu_custom_call.1} parent=1 // pred_check_branch
      %120 = sbr.rel (0) target = $region29
    $region28: #{tpu_custom_call.1} parent=1 // pred_region
      %122 = dma.done [#allocation4], 32
    $region29: #{tpu_custom_call.1} parent=1 // pred_fallthru
      _
    %123 = vsyncpa [#allocation3], 1
    %124 = vsyncpa [#allocation6], 1
    %125 = vsyncpa [#allocation4], 1

</llo_original>
